<compile_context>
chip_gen: v5e
topology: v5e:2x2
jax: 0.10.0
libtpu: 0.0.40
codegen_flags: <defaults>
</compile_context>

<pallas_src>
import jax
import jax.numpy as jnp
from jax.experimental import pallas as pl
from jax.experimental.pallas import tpu as pltpu

_MIB = 1024 * 1024


# ----------------------------- Pallas kernels --------------------------------

def _dot3(x, w):
    """(Bb, R, K) @ (K, N) -> (Bb, R, N) with f32 accumulation.

    Flattens the leading dims into one MXU-filling M tile when that is a pure
    relabel (R multiple of 8 -> sublane aligned); otherwise contracts the 3-D
    operand directly (no in-kernel relayout).
    """
    Bb, R, K = x.shape
    N = w.shape[1]
    if R % 8 == 0:
        y = jnp.dot(x.reshape(Bb * R, K), w, preferred_element_type=jnp.float32)
        return y.reshape(Bb, R, N)
    return jax.lax.dot_general(x, w, (((2,), (0,)), ((), ())),
                               preferred_element_type=jnp.float32)


def _gcn_conv_skip_kernel(x_ref, xcat_ref, adj_ref, w_ref, wtaps_ref, b_ref, o_ref):
    """GCN + Conv1d(k=5, pad=2) skip, one (batch block, T-row tile) per step.

    x_ref     : (Bb, T,  Cin)     full time extent (needed for the aggregation K)
    xcat_ref  : (Bb, Tr, 5*Cin)   conv taps stacked along K for this row tile
    adj_ref   : (Bb, Tr, T)       adjacency rows of this tile
    w_ref     : (Cin,   Coutp)    W.T, zero-padded to Coutp columns
    wtaps_ref : (5*Cin, Coutp)    conv taps stacked along K, zero-padded columns
    b_ref     : (1, 1,  Coutp)    bias + conv bias
    o_ref     : (Bb, Tr, Coutp)
    """
    h = _dot3(x_ref[...], w_ref[...])                       # (Bb, T, Coutp)  f32
    skip = _dot3(xcat_ref[...], wtaps_ref[...])             # (Bb, Tr, Coutp) f32
    # TODO(synk): for very small T, block-diagonalizing adj across the Bb batch
    # would turn this batched einsum (K=T) into one MXU-filling matmul.
    y = jnp.einsum('bts,bsd->btd', adj_ref[...], h.astype(adj_ref.dtype),
                   preferred_element_type=jnp.float32)      # (Bb, Tr, Coutp)
    o_ref[...] = (y + skip + b_ref[...]).astype(o_ref.dtype)


def _gcn_simple_kernel(x_ref, adj_ref, w_ref, b_ref, o_ref):
    """GCN with identity skip / no skip; the skip scale is folded into w/b."""
    h = _dot3(x_ref[...], w_ref[...])
    y = jnp.einsum('bts,bsd->btd', adj_ref[...], h.astype(adj_ref.dtype),
                   preferred_element_type=jnp.float32)
    o_ref[...] = (y + b_ref[...]).astype(o_ref.dtype)


# ----------------------------- Wrapper helpers --------------------------------

def _tpu_generation():
    try:
        kind = jax.devices()[0].device_kind.lower()
    except Exception:
        return None
    for gen in ("v7", "v6", "v5", "v4"):
        if gen in kind:
            return gen
    return None


def _vmem_params(gen):
    """(per-step VMEM budget, CompilerParams vmem_limit_bytes) per generation."""
    if gen in ("v4", "v5", "v6"):
        return 56 * _MIB, 96 * _MIB      # 128 MiB physical VMEM
    return 20 * _MIB, 44 * _MIB          # v7x (64 MiB physical) / unknown: safe


def _default_matmul_dtype(gen):
    # bf16 operands (f32 accumulate) on v6e/v7x: halves adj DMA bytes and doubles
    # MXU throughput; v5e keeps f32 by default (no bf16 VPU -> cast cost).
    return jnp.bfloat16 if gen in ("v6", "v7") else jnp.float32


def _select_tiling(B, T, Cin, tap_cin, Coutp, mm_bytes, out_bytes, budget_bytes,
                   target_rows=512):
    """Pick (Bb, Tr): batch block and T-row tile.

    Counts double-buffered pipelined blocks, single-buffered invariants and the
    in-kernel f32 intermediates (h / skip / y) against `budget_bytes`.
    """
    def step_bytes(bb, tr):
        pipelined = 2 * mm_bytes * (bb * T * Cin           # x (full T)
                                    + bb * tr * tap_cin    # xcat row tile
                                    + bb * tr * T)         # adj row tile
        pipelined += 2 * out_bytes * bb * tr * Coutp       # output tile
        invariants = (Cin + tap_cin) * Coutp * mm_bytes + Coutp * 4
        inter = (bb * T * Coutp * (4 + mm_bytes)           # h (f32) + cast copy
                 + 3 * bb * tr * Coutp * 4)                # skip, y, sum temps
        return int(1.15 * (pipelined + invariants + inter))

    # 1) Full rows per step (Tr = T); grow the batch block over divisors of B.
    bb_best = None
    for d in range(1, B + 1):
        if B % d:
            continue
        if step_bytes(d, T) > budget_bytes:
            break
        bb_best = d
        if d * T >= target_rows:        # flattened M already fills the MXU
            break
    if bb_best is not None:
        return bb_best, T

    # 2) Bb = 1; shrink the row tile over sublane-aligned divisors of T.
    row_divs = [t for t in range(T, 7, -1) if T % t == 0 and (t % 8 == 0 or t == T)]
    for tr in row_divs:
        if step_bytes(1, tr) <= budget_bytes:
            return 1, tr
    # TODO(synk): for extreme T additionally tile the contraction dim of the
    # adjacency aggregation (extra grid axis + f32 accumulator + pl.when finalize).
    return 1, (row_divs[-1] if row_divs else T)


def _invariant_spec(block_shape, index_map):
    """Single-buffer grid-invariant operands (weights / bias)."""
    try:
        return pl.BlockSpec(block_shape, index_map, pipeline_mode=pl.Buffered(1))
    except (AttributeError, TypeError):
        return pl.BlockSpec(block_shape, index_map)


# ------------------------------- Wrapper --------------------------------------

def graph_convolution(inputs, adj, weight, bias=None, conv_w=None, conv_b=None,
                      skip_connection=True, matmul_dtype=None, return_padded=False):
    """Pallas implementation of GraphConvolution.forward.

    inputs : (B, T, Cin) f32
    adj    : (B, T, T)   f32
    weight : (Cout, Cin) f32
    bias   : (Cout,)     f32 or None
    conv_w : (Cout, Cin, 5) f32   (required when skip_connection and Cin != Cout)
    conv_b : (Cout,)        f32 or None
    matmul_dtype  : None -> bf16 on v6e/v7x, f32 otherwise; accumulation is f32.
    return_padded : if True, return the lane-padded (B, T, ceil(Cout/128)*128)
                    output and skip the post-call channel slice.
    """
    B, T, Cin = inputs.shape
    Cout = weight.shape[0]
    out_dtype = inputs.dtype

    gen = _tpu_generation()
    mm_dtype = _default_matmul_dtype(gen) if matmul_dtype is None else matmul_dtype
    budget, vmem_limit = _vmem_params(gen)
    mm_bytes = jnp.dtype(mm_dtype).itemsize
    out_bytes = jnp.dtype(out_dtype).itemsize

    if bias is None:
        bias = jnp.zeros((Cout,), jnp.float32)

    # Lane-dense output channels: pad Cout to a multiple of 128 with zero weights
    # and zero bias (callers with 128-aligned Cout pay nothing for this).
    Coutp = pl.cdiv(Cout, 128) * 128
    pad_n = Coutp - Cout

    adj_c = adj.astype(mm_dtype)
    x_c = inputs.astype(mm_dtype)
    cparams = pltpu.CompilerParams(dimension_semantics=("parallel", "parallel"),
                                   vmem_limit_bytes=vmem_limit)

    conv_skip = skip_connection and Cin != Cout
    if conv_skip:
        if conv_w is None:
            raise ValueError("conv_w is required when skip_connection and Cin != Cout")
        if conv_b is None:
            conv_b = jnp.zeros((Cout,), jnp.float32)
        # Conv taps stacked along K: xcat[b, t, k*Cin+i] = x[b, t+k-2, i] (zero pad),
        # tap weight wtaps[k*Cin+i, o] = conv_w[o, i, k]  ->  skip = xcat @ wtaps.
        xpad = jnp.pad(inputs, ((0, 0), (2, 2), (0, 0)))
        xcat = jnp.concatenate([xpad[:, k:k + T, :] for k in range(5)],
                               axis=-1).astype(mm_dtype)                 # (B, T, 5*Cin)
        w_t = jnp.pad(weight.T, ((0, 0), (0, pad_n))).astype(mm_dtype)   # (Cin, Coutp)
        wtaps = jnp.concatenate([conv_w[:, :, k].T for k in range(5)], axis=0)
        wtaps = jnp.pad(wtaps, ((0, 0), (0, pad_n))).astype(mm_dtype)    # (5*Cin, Coutp)
        bias_all = jnp.pad((bias + conv_b).astype(jnp.float32),
                           (0, pad_n)).reshape(1, 1, Coutp)
        tap_cin = 5 * Cin
    else:
        # Identity skip doubles (agg + bias); fold the 2x into weights and bias.
        scale = 2.0 if skip_connection else 1.0
        w_t = jnp.pad(scale * weight.T, ((0, 0), (0, pad_n))).astype(mm_dtype)
        bias_all = jnp.pad(scale * bias.astype(jnp.float32),
                           (0, pad_n)).reshape(1, 1, Coutp)
        tap_cin = 0

    Bb, Tr = _select_tiling(B, T, Cin, tap_cin, Coutp, mm_bytes, out_bytes, budget)
    # v7x megacore: if the grid collapsed to a single step, split rows of T across
    # the two TensorCores instead of shrinking the batch block.
    if gen == "v7" and B // Bb == 1 and Tr == T and T % 16 == 0:
        Tr = T // 2
    grid = (B // Bb, T // Tr)

    if conv_skip:
        out = pl.pallas_call(
            _gcn_conv_skip_kernel,
            out_shape=jax.ShapeDtypeStruct((B, T, Coutp), out_dtype),
            grid_spec=pltpu.PrefetchScalarGridSpec(
                num_scalar_prefetch=0, grid=grid,
                in_specs=[
                    pl.BlockSpec((Bb, T, Cin), lambda b, r: (b, 0, 0)),
                    pl.BlockSpec((Bb, Tr, 5 * Cin), lambda b, r: (b, r, 0)),
                    pl.BlockSpec((Bb, Tr, T), lambda b, r: (b, r, 0)),
                    _invariant_spec((Cin, Coutp), lambda b, r: (0, 0)),
                    _invariant_spec((5 * Cin, Coutp), lambda b, r: (0, 0)),
                    _invariant_spec((1, 1, Coutp), lambda b, r: (0, 0, 0)),
                ],
                out_specs=pl.BlockSpec((Bb, Tr, Coutp), lambda b, r: (b, r, 0))),
            compiler_params=cparams,
        )(x_c, xcat, adj_c, w_t, wtaps, bias_all)
    else:
        out = pl.pallas_call(
            _gcn_simple_kernel,
            out_shape=jax.ShapeDtypeStruct((B, T, Coutp), out_dtype),
            grid_spec=pltpu.PrefetchScalarGridSpec(
                num_scalar_prefetch=0, grid=grid,
                in_specs=[
                    pl.BlockSpec((Bb, T, Cin), lambda b, r: (b, 0, 0)),
                    pl.BlockSpec((Bb, Tr, T), lambda b, r: (b, r, 0)),
                    _invariant_spec((Cin, Coutp), lambda b, r: (0, 0)),
                    _invariant_spec((1, 1, Coutp), lambda b, r: (0, 0, 0)),
                ],
                out_specs=pl.BlockSpec((Bb, Tr, Coutp), lambda b, r: (b, r, 0))),
            compiler_params=cparams,
        )(x_c, adj_c, w_t, bias_all)

    if pad_n and not return_padded:
        out = out[:, :, :Cout]
    return out


# ----------------------------- Reference (pure JAX) ----------------------------

def reference_forward(inputs, adj, weight, bias, conv_w=None, conv_b=None,
                      skip_connection=True):
    x = jnp.matmul(inputs, weight.T)
    x = jnp.matmul(adj, x)
    x = x + bias
    Cin, Cout = inputs.shape[-1], weight.shape[0]
    if skip_connection and Cin != Cout:
        xi = jnp.transpose(inputs, (0, 2, 1))            # (B, Cin, T)
        proj = jax.lax.conv_general_dilated(
            xi, conv_w, window_strides=(1,), padding=[(2, 2)],
            dimension_numbers=("NCH", "OIH", "NCH"))
        proj = proj + conv_b[None, :, None]
        return x + jnp.transpose(proj, (0, 2, 1))
    if skip_connection:
        return x + x
    return x


# --------------------------------- Main ----------------------------------------

if __name__ == "__main__":
    B, T, Cin, Cout = 2, 16, 16, 32
    key = jax.random.PRNGKey(0)
    k_in, k_adj, k_w, k_cw, k_cb, k_w2 = jax.random.split(key, 6)

    inputs = jax.random.normal(k_in, (B, T, Cin), dtype=jnp.float32)
    adj = jax.random.uniform(k_adj, (B, T, T), dtype=jnp.float32)
    adj = adj / jnp.sum(adj, axis=-1, keepdims=True)     # row-normalized adjacency

    # Parameters (deterministic, matching PyTorch init distributions)
    xav = (6.0 / (Cin + Cout)) ** 0.5                    # xavier_uniform_
    weight = jax.random.uniform(k_w, (Cout, Cin), minval=-xav, maxval=xav,
                                dtype=jnp.float32)
    bias = jnp.full((Cout,), 0.1, dtype=jnp.float32)     # constant_(bias, 0.1)
    cbound = 1.0 / ((Cin * 5) ** 0.5)                    # Conv1d default kaiming bound
    conv_w = jax.random.uniform(k_cw, (Cout, Cin, 5), minval=-cbound, maxval=cbound,
                                dtype=jnp.float32)
    conv_b = jax.random.uniform(k_cb, (Cout,), minval=-cbound, maxval=cbound,
                                dtype=jnp.float32)

    # Case 1: Cin != Cout -> Conv1d skip projection path (f32 operands, tight check).
    out = graph_convolution(inputs, adj, weight, bias, conv_w, conv_b,
                            skip_connection=True, matmul_dtype=jnp.float32)
    out = jax.block_until_ready(out)
    ref = reference_forward(inputs, adj, weight, bias, conv_w, conv_b,
                            skip_connection=True)
    assert out.shape == (B, T, Cout)
    assert jnp.allclose(out, ref, rtol=1e-4, atol=1e-4), "conv-skip path mismatch"

    # Case 2: Cin == Cout -> identity skip (x + x), f32 operands.
    xav2 = (6.0 / (Cin + Cin)) ** 0.5
    weight2 = jax.random.uniform(k_w2, (Cin, Cin), minval=-xav2, maxval=xav2,
                                 dtype=jnp.float32)
    bias2 = jnp.full((Cin,), 0.1, dtype=jnp.float32)
    out2 = graph_convolution(inputs, adj, weight2, bias2,
                             skip_connection=True, matmul_dtype=jnp.float32)
    out2 = jax.block_until_ready(out2)
    ref2 = reference_forward(inputs, adj, weight2, bias2, skip_connection=True)
    assert out2.shape == (B, T, Cin)
    assert jnp.allclose(out2, ref2, rtol=1e-4, atol=1e-4), "identity-skip path mismatch"

    # Case 3: no skip connection (Cin == Cout config).
    out3 = graph_convolution(inputs, adj, weight2, bias2,
                             skip_connection=False, matmul_dtype=jnp.float32)
    out3 = jax.block_until_ready(out3)
    ref3 = reference_forward(inputs, adj, weight2, bias2, skip_connection=False)
    assert jnp.allclose(out3, ref3, rtol=1e-4, atol=1e-4), "no-skip path mismatch"

    # Case 4: default (auto) matmul dtype -- bf16 on v6e/v7x, so loose tolerance.
    out4 = graph_convolution(inputs, adj, weight, bias, conv_w, conv_b,
                             skip_connection=True)
    out4 = jax.block_until_ready(out4)
    assert out4.shape == (B, T, Cout)
    assert jnp.allclose(out4, ref, rtol=5e-2, atol=5e-2), "auto-dtype path mismatch"

    print("KERNEL_OK")
</pallas_src>

<mosaic_0001>
module attributes {stable_mosaic.version = 11 : i64} {
  func.func @_gcn_conv_skip_kernel(%arg0: i32, %arg1: i32, %arg2: memref<2x16x16xf32, #tpu.memory_space<vmem>>, %arg3: memref<2x16x80xf32, #tpu.memory_space<vmem>>, %arg4: memref<2x16x16xf32, #tpu.memory_space<vmem>>, %arg5: memref<16x128xf32, #tpu.memory_space<vmem>>, %arg6: memref<80x128xf32, #tpu.memory_space<vmem>>, %arg7: memref<1x1x128xf32, #tpu.memory_space<vmem>>, %arg8: memref<2x16x128xf32, #tpu.memory_space<vmem>>) attributes {dimension_semantics = [#tpu.dimension_semantics<parallel>, #tpu.dimension_semantics<parallel>], iteration_bounds = array<i64: 1, 1>, scalar_prefetch = 0 : i64, scratch_operands = 0 : i64, tpu.core_type = #tpu.core_type<tc>, window_params = [{transform_indices = @transform_0, window_bounds = array<i64: 2, 16, 16>}, {transform_indices = @transform_1, window_bounds = array<i64: 2, 16, 80>}, {transform_indices = @transform_2, window_bounds = array<i64: 2, 16, 16>}, {pipeline_mode = #tpu.pipeline_mode<synchronous>, transform_indices = @transform_3, window_bounds = array<i64: 16, 128>}, {pipeline_mode = #tpu.pipeline_mode<synchronous>, transform_indices = @transform_4, window_bounds = array<i64: 80, 128>}, {pipeline_mode = #tpu.pipeline_mode<synchronous>, transform_indices = @transform_5, window_bounds = array<i64: 1, 1, 128>}, {transform_indices = @transform_6, window_bounds = array<i64: 2, 16, 128>}]} {
    %c0 = arith.constant 0 : index
    %c0_0 = arith.constant 0 : index
    %c0_1 = arith.constant 0 : index
    %0 = vector.load %arg2[%c0, %c0_0, %c0_1] : memref<2x16x16xf32, #tpu.memory_space<vmem>>, vector<2x16x16xf32>
    %c0_2 = arith.constant 0 : index
    %c0_3 = arith.constant 0 : index
    %1 = vector.load %arg5[%c0_2, %c0_3] : memref<16x128xf32, #tpu.memory_space<vmem>>, vector<16x128xf32>
    %2 = vector.shape_cast %0 : vector<2x16x16xf32> to vector<32x16xf32>
    %cst = arith.constant dense<0.000000e+00> : vector<32x128xf32>
    %3 = tpu.matmul %2, %1, %cst {dimension_numbers = #tpu.dot_dimension_numbers<[1], [0], [0], [1], [0, 0, 1, 1], [], []>} : vector<32x16xf32>, vector<16x128xf32>, vector<32x128xf32> -> vector<32x128xf32>
    %4 = vector.shape_cast %3 : vector<32x128xf32> to vector<2x16x128xf32>
    %c0_4 = arith.constant 0 : index
    %c0_5 = arith.constant 0 : index
    %c0_6 = arith.constant 0 : index
    %5 = vector.load %arg3[%c0_4, %c0_5, %c0_6] : memref<2x16x80xf32, #tpu.memory_space<vmem>>, vector<2x16x80xf32>
    %c0_7 = arith.constant 0 : index
    %c0_8 = arith.constant 0 : index
    %6 = vector.load %arg6[%c0_7, %c0_8] : memref<80x128xf32, #tpu.memory_space<vmem>>, vector<80x128xf32>
    %7 = vector.shape_cast %5 : vector<2x16x80xf32> to vector<32x80xf32>
    %cst_9 = arith.constant dense<0.000000e+00> : vector<32x128xf32>
    %8 = tpu.matmul %7, %6, %cst_9 {dimension_numbers = #tpu.dot_dimension_numbers<[1], [0], [0], [1], [0, 0, 1, 1], [], []>} : vector<32x80xf32>, vector<80x128xf32>, vector<32x128xf32> -> vector<32x128xf32>
    %9 = vector.shape_cast %8 : vector<32x128xf32> to vector<2x16x128xf32>
    %c0_10 = arith.constant 0 : index
    %c0_11 = arith.constant 0 : index
    %c0_12 = arith.constant 0 : index
    %10 = vector.load %arg4[%c0_10, %c0_11, %c0_12] : memref<2x16x16xf32, #tpu.memory_space<vmem>>, vector<2x16x16xf32>
    "tpu.trace_start"() <{level = 10 : i32, message = "bts,bsd->btd"}> : () -> ()
    %cst_13 = arith.constant dense<0.000000e+00> : vector<2x16x128xf32>
    %11 = tpu.matmul %10, %4, %cst_13 {dimension_numbers = #tpu.dot_dimension_numbers<[2], [1], [1], [2], [0, 0, 0, 1, 1, 2], [0], [0]>} : vector<2x16x16xf32>, vector<2x16x128xf32>, vector<2x16x128xf32> -> vector<2x16x128xf32>
    "tpu.trace_stop"() : () -> ()
    %12 = arith.addf %11, %9 : vector<2x16x128xf32>
    %c0_14 = arith.constant 0 : index
    %c0_15 = arith.constant 0 : index
    %c0_16 = arith.constant 0 : index
    %13 = vector.load %arg7[%c0_14, %c0_15, %c0_16] : memref<1x1x128xf32, #tpu.memory_space<vmem>>, vector<1x1x128xf32>
    %14 = vector.broadcast %13 : vector<1x1x128xf32> to vector<2x16x128xf32>
    %15 = arith.addf %12, %14 : vector<2x16x128xf32>
    %c0_17 = arith.constant 0 : index
    %c0_18 = arith.constant 0 : index
    %c0_19 = arith.constant 0 : index
    %16 = vector.load %arg8[%c0_17, %c0_18, %c0_19] : memref<2x16x128xf32, #tpu.memory_space<vmem>>, vector<2x16x128xf32>
    tpu.vector_store %arg8[%c0_17, %c0_18, %c0_19], %15 {strides = array<i32>} : memref<2x16x128xf32, #tpu.memory_space<vmem>>, vector<2x16x128xf32>,
    return
  }
  func.func @transform_0(%arg0: i32, %arg1: i32) -> (i32, i32, i32) {
    %c0_i32 = arith.constant 0 : i32
    %c0_i32_0 = arith.constant 0 : i32
    %c0_i32_1 = arith.constant 0 : i32
    return %arg0, %c0_i32, %c0_i32_0 : i32, i32, i32
  }
  func.func @transform_1(%arg0: i32, %arg1: i32) -> (i32, i32, i32) {
    %c0_i32 = arith.constant 0 : i32
    %c0_i32_0 = arith.constant 0 : i32
    return %arg0, %arg1, %c0_i32 : i32, i32, i32
  }
  func.func @transform_2(%arg0: i32, %arg1: i32) -> (i32, i32, i32) {
    %c0_i32 = arith.constant 0 : i32
    %c0_i32_0 = arith.constant 0 : i32
    return %arg0, %arg1, %c0_i32 : i32, i32, i32
  }
  func.func @transform_3(%arg0: i32, %arg1: i32) -> (i32, i32) {
    %c0_i32 = arith.constant 0 : i32
    %c0_i32_0 = arith.constant 0 : i32
    %c0_i32_1 = arith.constant 0 : i32
    return %c0_i32, %c0_i32_0 : i32, i32
  }
  func.func @transform_4(%arg0: i32, %arg1: i32) -> (i32, i32) {
    %c0_i32 = arith.constant 0 : i32
    %c0_i32_0 = arith.constant 0 : i32
    %c0_i32_1 = arith.constant 0 : i32
    return %c0_i32, %c0_i32_0 : i32, i32
  }
  func.func @transform_5(%arg0: i32, %arg1: i32) -> (i32, i32, i32) {
    %c0_i32 = arith.constant 0 : i32
    %c0_i32_0 = arith.constant 0 : i32
    %c0_i32_1 = arith.constant 0 : i32
    %c0_i32_2 = arith.constant 0 : i32
    return %c0_i32, %c0_i32_0, %c0_i32_1 : i32, i32, i32
  }
  func.func @transform_6(%arg0: i32, %arg1: i32) -> (i32, i32, i32) {
    %c0_i32 = arith.constant 0 : i32
    %c0_i32_0 = arith.constant 0 : i32
    return %arg0, %arg1, %c0_i32 : i32, i32, i32
  }
}

</mosaic_0001>

<llo_original>
// kernel: tpu_custom_call.1
$region0: #{tpu_custom_call.1}
  #allocation0 [shape = 'u32[]', space=smem, size = 0x4, offset = 0x4, fixed_abs, tag = 'smem constant byte address 0x4 - core index']
  #allocation1 [shape = 'u32[72,128]{1,0:T(1,128)}', space=vmem, size = 0x9000, scoped, tag = 'internal scratch']
  %s0 = inlined_call_operand.hbm [shape: f32[2,16,16], index: 0, kind: input, shape index: {}]
  %s1 = inlined_call_operand.hbm [shape: f32[2,16,80], index: 1, kind: input, shape index: {}]
  %s2 = inlined_call_operand.hbm [shape: f32[2,16,16], index: 2, kind: input, shape index: {}]
  %s3 = inlined_call_operand.hbm [shape: f32[16,128], index: 3, kind: input, shape index: {}]
  %s4 = inlined_call_operand.hbm [shape: f32[80,128], index: 4, kind: input, shape index: {}]
  %s5 = inlined_call_operand.vmem [shape: f32[1,1,128], index: 5, kind: input, shape index: {}]
  %s6 = inlined_call_operand.hbm [shape: f32[2,16,128], index: 6, kind: output, shape index: {}]
  %s7 = sld [smem:[#allocation0]]
  $region54: #{tpu_custom_call.1} parent=0
    _
  %s9 = ssub.s32 1, %s7
  %s10 = scalar_select 0, %s9, %s7
  $region1: #{tpu_custom_call.1} parent=0
    #allocation2 [shape = 'u8[16384]{0}', space=vmem, size = 0x4000, scoped, tag = 'input window, operand 0, single buffered']
    #allocation3 [shape = 's32[1]{0}', space=sflag, size = 0x4, scoped, tag = 'scoped memory for tpu_custom_call.1']
    #allocation4 [shape = 's32[1]{0}', space=sflag, size = 0x4, scoped, tag = 'scoped memory for tpu_custom_call.1']
    #allocation5 [shape = 'u8[16384]{0}', space=vmem, size = 0x4000, scoped, tag = 'input window, operand 1, single buffered']
    #allocation6 [shape = 's32[1]{0}', space=sflag, size = 0x4, scoped, tag = 'scoped memory for tpu_custom_call.1']
    #allocation7 [shape = 'u8[16384]{0}', space=vmem, size = 0x4000, scoped, tag = 'input window, operand 2, single buffered']
    #allocation8 [shape = 'u8[8192]{0}', space=vmem, size = 0x2000, scoped, tag = 'input window, operand 3, single buffered']
    #allocation9 [shape = 's32[1]{0}', space=sflag, size = 0x4, scoped, tag = 'scoped memory for tpu_custom_call.1']
    #allocation10 [shape = 'u8[40960]{0}', space=vmem, size = 0xa000, scoped, tag = 'input window, operand 4, single buffered']
    #allocation11 [shape = 'u8[16384]{0}', space=vmem, size = 0x4000, scoped, tag = 'output window, operand 0, single buffered']
    %11 = vsyncpa [#allocation3], 0
    %12 = vsyncpa [#allocation6], 0
    %13 = vsyncpa [#allocation9], 0
    %14 = vsyncpa [#allocation4], 0
    // Predicated region
    $region2: #{tpu_custom_call.1} parent=1 // pred_check
      _
    $region3: #{tpu_custom_call.1} parent=1 // pred_check_branch
      %16 = sbr.rel (0) target = $region5
    $region4: #{tpu_custom_call.1} parent=1 // pred_region
      %18 = vsyncadd [#allocation3], 0
      %s19 = sshll.u32 %s0, 4
      %s20 = int_to_ptr.hbm [resolvable:$true] %s19
      %s21 = sshll.u32 [#allocation2], 4
      %s22 = int_to_ptr.vmem [resolvable:$true] %s21
      %27 = dma.hbm_to_vmem [thread:$0]  %s20, 512, %s22, [#allocation3], 128, 128, 8
    $region5: #{tpu_custom_call.1} parent=1 // pred_fallthru
      _
    // Predicated region
    $region6: #{tpu_custom_call.1} parent=1 // pred_check
      _
    $region7: #{tpu_custom_call.1} parent=1 // pred_check_branch
      %29 = sbr.rel (0) target = $region9
    $region8: #{tpu_custom_call.1} parent=1 // pred_region
      %31 = vsyncadd [#allocation6], 0
      %s32 = sshll.u32 %s1, 4
      %s33 = int_to_ptr.hbm [resolvable:$true] %s32
      %s34 = sshll.u32 [#allocation5], 4
      %s35 = int_to_ptr.vmem [resolvable:$true] %s34
      %40 = dma.hbm_to_vmem [thread:$0]  %s33, 512, %s35, [#allocation6], 128, 128, 8
    $region9: #{tpu_custom_call.1} parent=1 // pred_fallthru
      _
    // Predicated region
    $region10: #{tpu_custom_call.1} parent=1 // pred_check
      _
    $region11: #{tpu_custom_call.1} parent=1 // pred_check_branch
      %42 = sbr.rel (0) target = $region13
    $region12: #{tpu_custom_call.1} parent=1 // pred_region
      %44 = vsyncadd [#allocation6], 0
      %s45 = sshll.u32 %s2, 4
      %s46 = int_to_ptr.hbm [resolvable:$true] %s45
      %s47 = sshll.u32 [#allocation7], 4
      %s48 = int_to_ptr.vmem [resolvable:$true] %s47
      %53 = dma.hbm_to_vmem [thread:$0]  %s46, 512, %s48, [#allocation6], 128, 128, 8
    $region13: #{tpu_custom_call.1} parent=1 // pred_fallthru
      _
    // Predicated region
    $region14: #{tpu_custom_call.1} parent=1 // pred_check
      _
    $region15: #{tpu_custom_call.1} parent=1 // pred_check_branch
      %55 = sbr.rel (0) target = $region17
    $region16: #{tpu_custom_call.1} parent=1 // pred_region
      %57 = vsyncadd [#allocation9], 0
      %s58 = sshll.u32 %s3, 4
      %s59 = int_to_ptr.hbm [resolvable:$true] %s58
      %s60 = sshll.u32 [#allocation8], 4
      %s61 = int_to_ptr.vmem [resolvable:$true] %s60
      %66 = dma.hbm_to_vmem [thread:$0]  %s59, 256, %s61, [#allocation9], 128, 128, 8
    $region17: #{tpu_custom_call.1} parent=1 // pred_fallthru
      _
    // Predicated region
    $region18: #{tpu_custom_call.1} parent=1 // pred_check
      _
    $region19: #{tpu_custom_call.1} parent=1 // pred_check_branch
      %68 = sbr.rel (0) target = $region21
    $region20: #{tpu_custom_call.1} parent=1 // pred_region
      %70 = vsyncadd [#allocation9], 0
      %s71 = sshll.u32 %s4, 4
      %s72 = int_to_ptr.hbm [resolvable:$true] %s71
      %s73 = sshll.u32 [#allocation10], 4
      %s74 = int_to_ptr.vmem [resolvable:$true] %s73
      %79 = dma.hbm_to_vmem [thread:$0]  %s72, 1280, %s74, [#allocation9], 128, 128, 8
    $region21: #{tpu_custom_call.1} parent=1 // pred_fallthru
      _
    // Predicated region
    $region22: #{tpu_custom_call.1} parent=1 // pred_check
      _
    $region23: #{tpu_custom_call.1} parent=1 // pred_check_branch
      %81 = sbr.rel (0) target = $region25
    $region24: #{tpu_custom_call.1} parent=1 // pred_region
      _
    $region25: #{tpu_custom_call.1} parent=1 // pred_fallthru
      _
    // Predicated region
    $region26: #{tpu_custom_call.1} parent=1 // pred_check
      _
    $region27: #{tpu_custom_call.1} parent=1 // pred_check_branch
      %83 = sbr.rel (0) target = $region29
    $region28: #{tpu_custom_call.1} parent=1 // pred_region
      %85 = dma.done [#allocation3], 512
    $region29: #{tpu_custom_call.1} parent=1 // pred_fallthru
      _
    // Predicated region
    $region30: #{tpu_custom_call.1} parent=1 // pred_check
      _
    $region31: #{tpu_custom_call.1} parent=1 // pred_check_branch
      %87 = sbr.rel (0) target = $region33
    $region32: #{tpu_custom_call.1} parent=1 // pred_region
      %89 = dma.done [#allocation6], 512
    $region33: #{tpu_custom_call.1} parent=1 // pred_fallthru
      _
    // Predicated region
    $region34: #{tpu_custom_call.1} parent=1 // pred_check
      _
    $region35: #{tpu_custom_call.1} parent=1 // pred_check_branch
      %91 = sbr.rel (0) target = $region37
    $region36: #{tpu_custom_call.1} parent=1 // pred_region
      %93 = dma.done [#allocation6], 512
    $region37: #{tpu_custom_call.1} parent=1 // pred_fallthru
      _
    // Predicated region
    $region38: #{tpu_custom_call.1} parent=1 // pred_check
      _
    $region39: #{tpu_custom_call.1} parent=1 // pred_check_branch
      %95 = sbr.rel (0) target = $region41
    $region40: #{tpu_custom_call.1} parent=1 // pred_region
      %97 = dma.done [#allocation9], 256
    $region41: #{tpu_custom_call.1} parent=1 // pred_fallthru
      _
    // Predicated region
    $region42: #{tpu_custom_call.1} parent=1 // pred_check
      _
    $region43: #{tpu_custom_call.1} parent=1 // pred_check_branch
      %99 = sbr.rel (0) target = $region45
    $region44: #{tpu_custom_call.1} parent=1 // pred_region
      %101 = dma.done [#allocation9], 1280
    $region45: #{tpu_custom_call.1} parent=1 // pred_fallthru
      _
    %v102 = vld [vmem:[#allocation2] sm:$0xff]
    %v103 = vld [vmem:[#allocation2 + $0x8] sm:$0xff]
    %v104 = vld [vmem:[#allocation2 + $0x10] sm:$0xff]
    %v105 = vld [vmem:[#allocation2 + $0x18] sm:$0xff]
    %v106 = vld [vmem:[#allocation8] sm:$0xff]
    %v107 = vld [vmem:[#allocation8 + $0x8] sm:$0xff]
    %vm108 = vcmask 130048
    %v110 = vsel %vm108, %v102, 0
    %v113 = vsel %vm108, %v103, 0
    %v116 = vsel %vm108, %v104, 0
    %v119 = vsel %vm108, %v105, 0
    %121 = vmatpush.msra.mxu0 0.0
    %122 = vmatpush.msra.mxu0 0.0
    %123 = vmatpush.msra.mxu0 0.0
    %124 = vmatpush.msra.mxu0 0.0
    %125 = vmatpush.msra.mxu0 0.0
    %126 = vmatpush.msra.mxu0 0.0
    %127 = vmatpush.msra.mxu0 0.0
    %128 = vmatpush.msra.mxu0 0.0
    %129 = vmatpush.msra.mxu0 0.0
    %130 = vmatpush.msra.mxu0 0.0
    %131 = vmatpush.msra.mxu0 0.0
    %132 = vmatpush.msra.mxu0 0.0
    %133 = vmatpush.msra.mxu0 0.0
    %134 = vmatpush.msra.mxu0 0.0
    %135 = vmatpush.msra.mxu0 %v107
    %136 = vmatpush.msra.mxu0 %v106
    %137 = vmatmul.f32.gmra.mxu0 %v110
    %v138 = vpop.f32.mrf.mxu0
    %v139 = vadd.f32 0.0, %v138
    %140 = vmatmul.f32.gmra.mxu0 %v113
    %v141 = vpop.f32.mrf.mxu0
    %v142 = vadd.f32 0.0, %v141
    %143 = vmatmul.f32.gmra.mxu0 %v116
    %v144 = vpop.f32.mrf.mxu0
    %v145 = vadd.f32 0.0, %v144
    %146 = vmatmul.f32.gmra.mxu0 %v119
    %v147 = vpop.f32.mrf.mxu0
    %v148 = vadd.f32 0.0, %v147
    %149 = vdwg.mxu0
    %v150 = vld [vmem:[#allocation5] sm:$0xff]
    %v151 = vld [vmem:[#allocation5 + $0x8] sm:$0xff]
    %v152 = vld [vmem:[#allocation5 + $0x10] sm:$0xff]
    %v153 = vld [vmem:[#allocation5 + $0x18] sm:$0xff]
    %v154 = vld [vmem:[#allocation10] sm:$0xff]
    %v155 = vld [vmem:[#allocation10 + $0x8] sm:$0xff]
    %v156 = vld [vmem:[#allocation10 + $0x10] sm:$0xff]
    %v157 = vld [vmem:[#allocation10 + $0x18] sm:$0xff]
    %v158 = vld [vmem:[#allocation10 + $0x20] sm:$0xff]
    %v159 = vld [vmem:[#allocation10 + $0x28] sm:$0xff]
    %v160 = vld [vmem:[#allocation10 + $0x30] sm:$0xff]
    %v161 = vld [vmem:[#allocation10 + $0x38] sm:$0xff]
    %v162 = vld [vmem:[#allocation10 + $0x40] sm:$0xff]
    %v163 = vld [vmem:[#allocation10 + $0x48] sm:$0xff]
    %vm164 = vcmask 654336
    %v166 = vsel %vm164, %v150, 0
    %v169 = vsel %vm164, %v151, 0
    %v172 = vsel %vm164, %v152, 0
    %v175 = vsel %vm164, %v153, 0
    %177 = vmatpush.msra.mxu0 0.0
    %178 = vmatpush.msra.mxu0 0.0
    %179 = vmatpush.msra.mxu0 0.0
    %180 = vmatpush.msra.mxu0 0.0
    %181 = vmatpush.msra.mxu0 0.0
    %182 = vmatpush.msra.mxu0 0.0
    %183 = vmatpush.msra.mxu0 %v163
    %184 = vmatpush.msra.mxu0 %v162
    %185 = vmatpush.msra.mxu0 %v161
    %186 = vmatpush.msra.mxu0 %v160
    %187 = vmatpush.msra.mxu0 %v159
    %188 = vmatpush.msra.mxu0 %v158
    %189 = vmatpush.msra.mxu0 %v157
    %190 = vmatpush.msra.mxu0 %v156
    %191 = vmatpush.msra.mxu0 %v155
    %192 = vmatpush.msra.mxu0 %v154
    %193 = vmatmul.f32.gmra.mxu0 %v166
    %v194 = vpop.f32.mrf.mxu0
    %v195 = vadd.f32 0.0, %v194
    %196 = vmatmul.f32.gmra.mxu0 %v169
    %v197 = vpop.f32.mrf.mxu0
    %v198 = vadd.f32 0.0, %v197
    %199 = vmatmul.f32.gmra.mxu0 %v172
    %v200 = vpop.f32.mrf.mxu0
    %v201 = vadd.f32 0.0, %v200
    %202 = vmatmul.f32.gmra.mxu0 %v175
    %v203 = vpop.f32.mrf.mxu0
    %v204 = vadd.f32 0.0, %v203
    %205 = vdwg.mxu0
    %v206 = vld [vmem:[#allocation7] sm:$0xff]
    %v207 = vld [vmem:[#allocation7 + $0x8] sm:$0xff]
    %v208 = vld [vmem:[#allocation7 + $0x10] sm:$0xff]
    %v209 = vld [vmem:[#allocation7 + $0x18] sm:$0xff]
    %v211 = vsel %vm108, %v206, 0
    %v214 = vsel %vm108, %v207, 0
    %216 = vmatpush.msra.mxu0 0.0
    %217 = vmatpush.msra.mxu0 0.0
    %218 = vmatpush.msra.mxu0 0.0
    %219 = vmatpush.msra.mxu0 0.0
    %220 = vmatpush.msra.mxu0 0.0
    %221 = vmatpush.msra.mxu0 0.0
    %222 = vmatpush.msra.mxu0 0.0
    %223 = vmatpush.msra.mxu0 0.0
    %224 = vmatpush.msra.mxu0 0.0
    %225 = vmatpush.msra.mxu0 0.0
    %226 = vmatpush.msra.mxu0 0.0
    %227 = vmatpush.msra.mxu0 0.0
    %228 = vmatpush.msra.mxu0 0.0
    %229 = vmatpush.msra.mxu0 0.0
    %230 = vmatpush.msra.mxu0 %v142
    %231 = vmatpush.msra.mxu0 %v139
    %232 = vmatmul.f32.gmra.mxu0 %v211
    %v233 = vpop.f32.mrf.mxu0
    %v234 = vadd.f32 %v195, %v233
    %235 = vmatmul.f32.gmra.mxu0 %v214
    %v236 = vpop.f32.mrf.mxu0
    %v237 = vadd.f32 %v198, %v236
    %238 = vdwg.mxu0
    %v240 = vsel %vm108, %v208, 0
    %v243 = vsel %vm108, %v209, 0
    %245 = vmatpush.msra.mxu0 0.0
    %246 = vmatpush.msra.mxu0 0.0
    %247 = vmatpush.msra.mxu0 0.0
    %248 = vmatpush.msra.mxu0 0.0
    %249 = vmatpush.msra.mxu0 0.0
    %250 = vmatpush.msra.mxu0 0.0
    %251 = vmatpush.msra.mxu0 0.0
    %252 = vmatpush.msra.mxu0 0.0
    %253 = vmatpush.msra.mxu0 0.0
    %254 = vmatpush.msra.mxu0 0.0
    %255 = vmatpush.msra.mxu0 0.0
    %256 = vmatpush.msra.mxu0 0.0
    %257 = vmatpush.msra.mxu0 0.0
    %258 = vmatpush.msra.mxu0 0.0
    %259 = vmatpush.msra.mxu0 %v148
    %260 = vmatpush.msra.mxu0 %v145
    %261 = vmatmul.f32.gmra.mxu0 %v240
    %v262 = vpop.f32.mrf.mxu0
    %v263 = vadd.f32 %v201, %v262
    %264 = vmatmul.f32.gmra.mxu0 %v243
    %v265 = vpop.f32.mrf.mxu0
    %v266 = vadd.f32 %v204, %v265
    %267 = vdwg.mxu0
    %v268 = vld [vmem:[%s5] sm:$0x1]
    %v270 = vperm.slane %v268, 0
    %v272 = vadd.f32 %v234, %v270
    %v273 = vadd.f32 %v237, %v270
    %v274 = vadd.f32 %v263, %v270
    %v275 = vadd.f32 %v266, %v270
    %276 = vst [vmem:[#allocation11] sm:$0xff] %v272
    %277 = vst [vmem:[#allocation11 + $0x8] sm:$0xff] %v273
    %278 = vst [vmem:[#allocation11 + $0x10] sm:$0xff] %v274
    %279 = vst [vmem:[#allocation11 + $0x18] sm:$0xff] %v275
    // Predicated region
    $region46: #{tpu_custom_call.1} parent=1 // pred_check
      _
    $region47: #{tpu_custom_call.1} parent=1 // pred_check_branch
      %281 = sbr.rel (0) target = $region49
    $region48: #{tpu_custom_call.1} parent=1 // pred_region
      %283 = vsyncadd [#allocation4], 0
      %s284 = sshll.u32 [#allocation11], 4
      %s285 = int_to_ptr.vmem [resolvable:$true] %s284
      %s286 = sshll.u32 %s6, 4
      %s287 = int_to_ptr.hbm [resolvable:$true] %s286
      %292 = dma.vmem_to_hbm [thread:$0]  %s285, 512, %s287, [#allocation4], 128, 128, 8
    $region49: #{tpu_custom_call.1} parent=1 // pred_fallthru
      _
    // Predicated region
    $region50: #{tpu_custom_call.1} parent=1 // pred_check
      _
    $region51: #{tpu_custom_call.1} parent=1 // pred_check_branch
      %294 = sbr.rel (0) target = $region53
    $region52: #{tpu_custom_call.1} parent=1 // pred_region
      %296 = dma.done [#allocation4], 512
    $region53: #{tpu_custom_call.1} parent=1 // pred_fallthru
      _
    %297 = vsyncpa [#allocation3], 1
    %298 = vsyncpa [#allocation6], 1
    %299 = vsyncpa [#allocation9], 1
    %300 = vsyncpa [#allocation4], 1

</llo_original>
